<compile_context>
chip_gen: v7x
topology: tpu7x:2x2x1
jax: 0.10.0
libtpu: 0.0.40
codegen_flags: <defaults>
</compile_context>

<pallas_src>
import jax
import jax.numpy as jnp
import numpy as np
from jax import lax
from jax.experimental import pallas as pl
from jax.experimental.pallas import tpu as pltpu


def _round_up(x, m):
    return (x + m - 1) // m * m


def joint_kernel(enc_ref, pred_ref, w_enc_ref, b_enc_ref, w_out_ref, b_out_ref,
                 out_ref, h_ref):
    # enc_ref:  (1, tT, E_pad)      compute dtype
    # pred_ref: (1, U1_pad, J_pad)  compute dtype (already projected by w_pred)
    # w_enc:    (E_pad, J_pad)      compute dtype
    # b_enc:    (1, J_pad)          f32
    # w_out:    (J_pad, tV)         compute dtype
    # b_out:    (1, tV)             f32
    # out_ref:  (1, tT, U1_pad, tV) out dtype
    # h_ref:    (tT, U1_pad, J_pad) compute dtype VMEM scratch (persists across v tiles)
    v = pl.program_id(2)
    tT, U1p, Jp = h_ref.shape
    tV = w_out_ref.shape[1]

    # ---- per-(b, t) work, hoisted out of the vocab-tile axis ----
    @pl.when(v == 0)
    def _():
        enc_p = (jnp.dot(enc_ref[0], w_enc_ref[...],
                         preferred_element_type=jnp.float32)
                 + b_enc_ref[...])                                     # (tT, Jp) f32
        # Build h in 8-row (sublane-aligned) u-chunks: every scratch store is dense
        # and the transient f32 temporaries stay small.
        for u0 in range(0, U1p, 8):
            pred_blk = pred_ref[0, u0:u0 + 8, :].astype(jnp.float32)   # (8, Jp)
            h_blk = jnp.tanh(enc_p[:, None, :] + pred_blk[None, :, :])  # (tT, 8, Jp)
            h_ref[:, u0:u0 + 8, :] = h_blk.astype(h_ref.dtype)

    # ---- per-(b, t, v) work: one fused MXU matmul over all U+1 rows ----
    # (tT, U1p, Jp) -> (tT*U1p, Jp) is a free view (U1p % 8 == 0, Jp % 128 == 0).
    h2 = h_ref[...].reshape(tT * U1p, Jp)
    logits = (jnp.dot(h2, w_out_ref[...], preferred_element_type=jnp.float32)
              + b_out_ref[...])                                        # (tT*U1p, tV) f32
    out_ref[0] = logits.reshape(tT, U1p, tV).astype(out_ref.dtype)


def asr_decoder_forward(encoder_out, tokens, params,
                        compute_dtype=jnp.float32, out_dtype=jnp.float32):
    """encoder_out: (B, T, E) f32, tokens: (B, U) int32 -> logits (B, T, U+1, V)."""
    emb, w_enc, b_enc, w_pred, b_pred, w_out, b_out = (
        params["emb"], params["w_enc"], params["b_enc"],
        params["w_pred"], params["b_pred"], params["w_out"], params["b_out"])

    B, T, E = encoder_out.shape
    U = tokens.shape[1]
    U1 = U + 1
    J = w_enc.shape[1]
    V = w_out.shape[1]

    # ---- glue (XLA): prediction net = embedding gather; prepend zero blank frame;
    #      tiny predictor projection (only U+1 rows) hoisted out of the kernel. ----
    predictor_out = jnp.take(emb, tokens, axis=0)                       # (B, U, P)
    blank = jnp.zeros((B, 1, emb.shape[1]), dtype=predictor_out.dtype)
    predictor_out = jnp.concatenate([blank, predictor_out], axis=1)     # (B, U1, P)
    pred_p = (jnp.einsum("bup,pj->buj", predictor_out, w_pred,
                         precision=lax.Precision.HIGHEST) + b_pred[0])  # (B, U1, J) f32

    # ---- padded / tiled sizes (lane-dense J and V, 8-aligned U1, T tiles) ----
    cdt = compute_dtype
    cdt_bytes = jnp.dtype(cdt).itemsize
    out_bytes = jnp.dtype(out_dtype).itemsize
    is_bf16 = jnp.dtype(cdt) == jnp.dtype(jnp.bfloat16)

    J_pad = _round_up(J, 256 if is_bf16 else 128)   # MXU-K aligned for bf16
    E_pad = _round_up(E, 128)
    U1_pad = _round_up(U1, 8)

    # pick tV first, then pad V up to a multiple of it (no tV=128 fallback).
    tV = min(512, _round_up(V, 128))
    V_pad = _round_up(V, tV)

    # ---- VMEM-budget-aware tT selection ----
    def vmem_estimate(tt):
        dbl = 2  # double-buffered pipeline stages
        return (dbl * tt * E_pad * cdt_bytes              # encoder tile
                + dbl * U1_pad * J_pad * cdt_bytes        # predictor proj
                + dbl * E_pad * J_pad * cdt_bytes         # w_enc
                + dbl * J_pad * tV * cdt_bytes            # w_out tile
                + dbl * 8 * (J_pad + tV) * 4              # biases
                + dbl * tt * U1_pad * tV * out_bytes      # output block
                + tt * U1_pad * J_pad * cdt_bytes         # h scratch
                + 3 * tt * 8 * J_pad * 4 + tt * J_pad * 4)  # transient f32 temps

    try:
        vmem_cap = int(pltpu.get_tpu_info().vmem_capacity_bytes)
    except Exception:
        vmem_cap = 64 * 1024 * 1024     # conservative: v7x has 64 MiB per TensorCore
    budget = max(16 << 20, min(int(vmem_cap * 0.7), 96 << 20))

    t_full = min(_round_up(T, 8), 128)
    candidates = sorted({t_full} | {c for c in (128, 64, 32, 16, 8) if c <= t_full},
                        reverse=True)
    tT = candidates[-1]
    for c in candidates:
        if vmem_estimate(c) <= budget:
            tT = c
            break
    # keep both v7x TensorCores busy when there is only one (b, t) tile
    while B * (_round_up(T, tT) // tT) < 2 and tT > 8:
        tT = max(8, (tT // 2) // 8 * 8)
    T_pad = _round_up(T, tT)

    # ---- zero padding (exact: tanh(0)=0 and padded weight rows/cols are zero) ----
    enc_pad = jnp.pad(encoder_out,
                      ((0, 0), (0, T_pad - T), (0, E_pad - E))).astype(cdt)
    pred_pad = jnp.pad(pred_p,
                       ((0, 0), (0, U1_pad - U1), (0, J_pad - J))).astype(cdt)
    w_enc_p = jnp.pad(w_enc, ((0, E_pad - E), (0, J_pad - J))).astype(cdt)
    b_enc_p = jnp.pad(b_enc, ((0, 0), (0, J_pad - J))).astype(jnp.float32)
    w_out_p = jnp.pad(w_out, ((0, J_pad - J), (0, V_pad - V))).astype(cdt)
    b_out_p = jnp.pad(b_out, ((0, 0), (0, V_pad - V))).astype(jnp.float32)

    grid = (B, T_pad // tT, V_pad // tV)

    flops = (2 * B * T_pad * E_pad * J_pad
             + 2 * B * T_pad * U1_pad * J_pad * V_pad)
    transcendentals = B * T_pad * U1_pad * J_pad
    bytes_accessed = (enc_pad.size * cdt_bytes + pred_pad.size * cdt_bytes
                      + w_enc_p.size * cdt_bytes + w_out_p.size * cdt_bytes
                      + B * T_pad * U1_pad * V_pad * out_bytes)

    out_padded = pl.pallas_call(
        joint_kernel,
        out_shape=jax.ShapeDtypeStruct((B, T_pad, U1_pad, V_pad), out_dtype),
        grid=grid,
        in_specs=[
            pl.BlockSpec((1, tT, E_pad),     lambda b, t, v: (b, t, 0)),   # encoder
            pl.BlockSpec((1, U1_pad, J_pad), lambda b, t, v: (b, 0, 0)),   # pred proj
            pl.BlockSpec((E_pad, J_pad),     lambda b, t, v: (0, 0)),      # w_enc
            pl.BlockSpec((1, J_pad),         lambda b, t, v: (0, 0)),      # b_enc
            pl.BlockSpec((J_pad, tV),        lambda b, t, v: (0, v)),      # w_out tile
            pl.BlockSpec((1, tV),            lambda b, t, v: (0, v)),      # b_out tile
        ],
        out_specs=pl.BlockSpec((1, tT, U1_pad, tV), lambda b, t, v: (b, t, 0, v)),
        scratch_shapes=[pltpu.VMEM((tT, U1_pad, J_pad), cdt)],
        compiler_params=pltpu.CompilerParams(
            dimension_semantics=("parallel", "parallel", "arbitrary"),
            vmem_limit_bytes=int(budget)),
        cost_estimate=pl.CostEstimate(flops=int(flops),
                                      transcendentals=int(transcendentals),
                                      bytes_accessed=int(bytes_accessed)),
    )(enc_pad, pred_pad, w_enc_p, b_enc_p, w_out_p, b_out_p)

    # Kernel output is already in the module's (B, T, U+1, V) axis order: no transpose.
    if (T_pad, U1_pad, V_pad) == (T, U1, V):
        return out_padded
    return out_padded[:, :T, :U1, :V]


def reference_forward(encoder_out, tokens, params):
    """Pure-JAX f32 reference reproducing the PyTorch module semantics."""
    emb, w_enc, b_enc, w_pred, b_pred, w_out, b_out = (
        params["emb"], params["w_enc"], params["b_enc"],
        params["w_pred"], params["b_pred"], params["w_out"], params["b_out"])
    hp = lax.Precision.HIGHEST
    predictor_out = jnp.take(emb, tokens, axis=0)
    blank = jnp.zeros((predictor_out.shape[0], 1, predictor_out.shape[2]),
                      dtype=predictor_out.dtype)
    predictor_out = jnp.concatenate([blank, predictor_out], axis=1)
    enc_p = jnp.einsum("bte,ej->btj", encoder_out, w_enc, precision=hp) + b_enc[0]
    pred_p = jnp.einsum("bup,pj->buj", predictor_out, w_pred, precision=hp) + b_pred[0]
    h = jnp.tanh(enc_p[:, :, None, :] + pred_p[:, None, :, :])
    return jnp.einsum("btuj,jv->btuv", h, w_out, precision=hp) + b_out[0]


if __name__ == "__main__":
    # small config consistent with the module's forward
    config = dict(vocab_size=16, embed_dim=16, encoder_output_dim=32, joint_dim=32)
    B, T, U = 2, 8, 4

    V = config["vocab_size"]
    P = config["embed_dim"]
    E = config["encoder_output_dim"]
    J = config["joint_dim"]

    key = jax.random.PRNGKey(0)
    ks = jax.random.split(key, 8)

    params = {
        "emb":    0.1 * jax.random.normal(ks[0], (V, P), jnp.float32),
        "w_enc":  0.1 * jax.random.normal(ks[1], (E, J), jnp.float32),
        "b_enc":  0.1 * jax.random.normal(ks[2], (1, J), jnp.float32),
        "w_pred": 0.1 * jax.random.normal(ks[3], (P, J), jnp.float32),
        "b_pred": 0.1 * jax.random.normal(ks[4], (1, J), jnp.float32),
        "w_out":  0.1 * jax.random.normal(ks[5], (J, V), jnp.float32),
        "b_out":  0.1 * jax.random.normal(ks[6], (1, V), jnp.float32),
    }

    encoder_out = jax.random.normal(ks[7], (B, T, E), jnp.float32)
    tokens = jax.random.randint(jax.random.PRNGKey(1), (B, U), 0, V, jnp.int32)

    ref = reference_forward(encoder_out, tokens, params)

    # f32 path.
    logits = asr_decoder_forward(encoder_out, tokens, params)
    logits = jax.block_until_ready(logits)
    assert logits.shape == (B, T, U + 1, V), logits.shape
    assert bool(jnp.isfinite(logits).all())
    np.testing.assert_allclose(np.asarray(logits), np.asarray(ref),
                               rtol=1e-3, atol=1e-3)

    # bf16 activations/weights + bf16 output (f32 accumulation): loose sanity check.
    logits_bf16 = asr_decoder_forward(encoder_out, tokens, params,
                                      compute_dtype=jnp.bfloat16,
                                      out_dtype=jnp.bfloat16)
    logits_bf16 = jax.block_until_ready(logits_bf16)
    assert logits_bf16.shape == (B, T, U + 1, V), logits_bf16.shape
    lb = np.asarray(logits_bf16, dtype=np.float32)
    assert bool(np.isfinite(lb).all())
    np.testing.assert_allclose(lb, np.asarray(ref), rtol=1e-1, atol=1e-1)

    print("KERNEL_OK")
</pallas_src>

<mosaic_0001>
module attributes {stable_mosaic.version = 11 : i64} {
  func.func @joint_kernel(%arg0: i32, %arg1: i32, %arg2: i32, %arg3: memref<1x8x128xf32, #tpu.memory_space<vmem>>, %arg4: memref<1x8x128xf32, #tpu.memory_space<vmem>>, %arg5: memref<128x128xf32, #tpu.memory_space<vmem>>, %arg6: memref<1x128xf32, #tpu.memory_space<vmem>>, %arg7: memref<128x128xf32, #tpu.memory_space<vmem>>, %arg8: memref<1x128xf32, #tpu.memory_space<vmem>>, %arg9: memref<1x8x8x128xf32, #tpu.memory_space<vmem>>, %arg10: memref<8x8x128xf32, #tpu.memory_space<vmem>>) attributes {dimension_semantics = [#tpu.dimension_semantics<parallel>, #tpu.dimension_semantics<parallel>, #tpu.dimension_semantics<arbitrary>], iteration_bounds = array<i64: 2, 1, 1>, scalar_prefetch = 0 : i64, scratch_operands = 1 : i64, tpu.core_type = #tpu.core_type<tc>, window_params = [{transform_indices = @transform_0, window_bounds = array<i64: 1, 8, 128>}, {transform_indices = @transform_1, window_bounds = array<i64: 1, 8, 128>}, {pipeline_mode = #tpu.pipeline_mode<synchronous>, transform_indices = @transform_2, window_bounds = array<i64: 128, 128>}, {pipeline_mode = #tpu.pipeline_mode<synchronous>, transform_indices = @transform_3, window_bounds = array<i64: 1, 128>}, {transform_indices = @transform_4, window_bounds = array<i64: 128, 128>}, {transform_indices = @transform_5, window_bounds = array<i64: 1, 128>}, {transform_indices = @transform_6, window_bounds = array<i64: 1, 8, 8, 128>}]} {
    %c0_i32 = arith.constant 0 : i32
    %0 = arith.cmpi eq, %arg2, %c0_i32 : i32
    %1 = arith.extui %0 : i1 to i32
    %c0_i32_0 = arith.constant 0 : i32
    %2 = arith.cmpi ne, %1, %c0_i32_0 : i32
    scf.if %2 {
      %c0_11 = arith.constant 0 : index
      %c0_12 = arith.constant 0 : index
      %c0_13 = arith.constant 0 : index
      %14 = vector.load %arg3[%c0_11, %c0_12, %c0_13] : memref<1x8x128xf32, #tpu.memory_space<vmem>>, vector<1x8x128xf32>
      %15 = vector.shape_cast %14 : vector<1x8x128xf32> to vector<8x128xf32>
      %c0_14 = arith.constant 0 : index
      %c0_15 = arith.constant 0 : index
      %16 = vector.load %arg5[%c0_14, %c0_15] : memref<128x128xf32, #tpu.memory_space<vmem>>, vector<128x128xf32>
      %cst_16 = arith.constant dense<0.000000e+00> : vector<8x128xf32>
      %17 = tpu.matmul %15, %16, %cst_16 {dimension_numbers = #tpu.dot_dimension_numbers<[1], [0], [0], [1], [0, 0, 1, 1], [], []>} : vector<8x128xf32>, vector<128x128xf32>, vector<8x128xf32> -> vector<8x128xf32>
      %c0_17 = arith.constant 0 : index
      %c0_18 = arith.constant 0 : index
      %18 = vector.load %arg6[%c0_17, %c0_18] : memref<1x128xf32, #tpu.memory_space<vmem>>, vector<1x128xf32>
      %19 = vector.broadcast %18 : vector<1x128xf32> to vector<8x128xf32>
      %20 = arith.addf %17, %19 : vector<8x128xf32>
      %c0_19 = arith.constant 0 : index
      %c0_20 = arith.constant 0 : index
      %c0_21 = arith.constant 0 : index
      %21 = vector.load %arg4[%c0_19, %c0_20, %c0_21] : memref<1x8x128xf32, #tpu.memory_space<vmem>>, vector<1x8x128xf32>
      %22 = vector.shape_cast %21 : vector<1x8x128xf32> to vector<8x128xf32>
      %23 = vector.shape_cast %20 : vector<8x128xf32> to vector<8x1x128xf32>
      %24 = vector.shape_cast %22 : vector<8x128xf32> to vector<1x8x128xf32>
      %25 = vector.broadcast %23 : vector<8x1x128xf32> to vector<8x8x128xf32>
      %26 = vector.broadcast %24 : vector<1x8x128xf32> to vector<8x8x128xf32>
      %27 = arith.addf %25, %26 : vector<8x8x128xf32>
      %28 = math.tanh %27 : vector<8x8x128xf32>
      %c0_22 = arith.constant 0 : index
      %c0_23 = arith.constant 0 : index
      %c0_24 = arith.constant 0 : index
      %29 = vector.load %arg10[%c0_22, %c0_23, %c0_24] : memref<8x8x128xf32, #tpu.memory_space<vmem>>, vector<8x8x128xf32>
      tpu.vector_store %arg10[%c0_22, %c0_23, %c0_24], %28 {strides = array<i32>} : memref<8x8x128xf32, #tpu.memory_space<vmem>>, vector<8x8x128xf32>,
    } else {
    }
    %c0 = arith.constant 0 : index
    %c0_1 = arith.constant 0 : index
    %c0_2 = arith.constant 0 : index
    %3 = vector.load %arg10[%c0, %c0_1, %c0_2] : memref<8x8x128xf32, #tpu.memory_space<vmem>>, vector<8x8x128xf32>
    %4 = vector.shape_cast %3 : vector<8x8x128xf32> to vector<64x128xf32>
    %c0_3 = arith.constant 0 : index
    %c0_4 = arith.constant 0 : index
    %5 = vector.load %arg7[%c0_3, %c0_4] : memref<128x128xf32, #tpu.memory_space<vmem>>, vector<128x128xf32>
    %cst = arith.constant dense<0.000000e+00> : vector<64x128xf32>
    %6 = tpu.matmul %4, %5, %cst {dimension_numbers = #tpu.dot_dimension_numbers<[1], [0], [0], [1], [0, 0, 1, 1], [], []>} : vector<64x128xf32>, vector<128x128xf32>, vector<64x128xf32> -> vector<64x128xf32>
    %c0_5 = arith.constant 0 : index
    %c0_6 = arith.constant 0 : index
    %7 = vector.load %arg8[%c0_5, %c0_6] : memref<1x128xf32, #tpu.memory_space<vmem>>, vector<1x128xf32>
    %8 = vector.broadcast %7 : vector<1x128xf32> to vector<64x128xf32>
    %9 = arith.addf %6, %8 : vector<64x128xf32>
    %10 = vector.shape_cast %9 : vector<64x128xf32> to vector<8x8x128xf32>
    %c0_7 = arith.constant 0 : index
    %c0_8 = arith.constant 0 : index
    %c0_9 = arith.constant 0 : index
    %c0_10 = arith.constant 0 : index
    %11 = vector.load %arg9[%c0_7, %c0_8, %c0_9, %c0_10] : memref<1x8x8x128xf32, #tpu.memory_space<vmem>>, vector<1x8x8x128xf32>
    %12 = vector.shape_cast %11 : vector<1x8x8x128xf32> to vector<8x8x128xf32>
    %13 = vector.shape_cast %10 : vector<8x8x128xf32> to vector<1x8x8x128xf32>
    tpu.vector_store %arg9[%c0_7, %c0_8, %c0_9, %c0_10], %13 {strides = array<i32>} : memref<1x8x8x128xf32, #tpu.memory_space<vmem>>, vector<1x8x8x128xf32>,
    return
  }
  func.func @transform_0(%arg0: i32, %arg1: i32, %arg2: i32) -> (i32, i32, i32) {
    %c0_i32 = arith.constant 0 : i32
    %c0_i32_0 = arith.constant 0 : i32
    return %arg0, %arg1, %c0_i32 : i32, i32, i32
  }
  func.func @transform_1(%arg0: i32, %arg1: i32, %arg2: i32) -> (i32, i32, i32) {
    %c0_i32 = arith.constant 0 : i32
    %c0_i32_0 = arith.constant 0 : i32
    %c0_i32_1 = arith.constant 0 : i32
    return %arg0, %c0_i32, %c0_i32_0 : i32, i32, i32
  }
  func.func @transform_2(%arg0: i32, %arg1: i32, %arg2: i32) -> (i32, i32) {
    %c0_i32 = arith.constant 0 : i32
    %c0_i32_0 = arith.constant 0 : i32
    %c0_i32_1 = arith.constant 0 : i32
    return %c0_i32, %c0_i32_0 : i32, i32
  }
  func.func @transform_3(%arg0: i32, %arg1: i32, %arg2: i32) -> (i32, i32) {
    %c0_i32 = arith.constant 0 : i32
    %c0_i32_0 = arith.constant 0 : i32
    %c0_i32_1 = arith.constant 0 : i32
    return %c0_i32, %c0_i32_0 : i32, i32
  }
  func.func @transform_4(%arg0: i32, %arg1: i32, %arg2: i32) -> (i32, i32) {
    %c0_i32 = arith.constant 0 : i32
    %c0_i32_0 = arith.constant 0 : i32
    return %c0_i32, %arg2 : i32, i32
  }
  func.func @transform_5(%arg0: i32, %arg1: i32, %arg2: i32) -> (i32, i32) {
    %c0_i32 = arith.constant 0 : i32
    %c0_i32_0 = arith.constant 0 : i32
    return %c0_i32, %arg2 : i32, i32
  }
  func.func @transform_6(%arg0: i32, %arg1: i32, %arg2: i32) -> (i32, i32, i32, i32) {
    %c0_i32 = arith.constant 0 : i32
    %c0_i32_0 = arith.constant 0 : i32
    return %arg0, %arg1, %c0_i32, %arg2 : i32, i32, i32, i32
  }
}

</mosaic_0001>

<llo_original>
// kernel: tpu_custom_call.1
$region0: #{tpu_custom_call.1}
  #allocation0 [shape = 'u32[]', space=smem, size = 0x4, offset = 0x4, fixed_abs, tag = 'smem constant byte address 0x4 - core index']
  #allocation1 [shape = 'u32[144,128]{1,0:T(1,128)}', space=vmem, size = 0x12000, scoped, tag = 'internal scratch']
  #allocation2 [shape = 'f32[8,8,128]{2,1,0:T(8,128)}', space=vmem, size = 0x8000, scoped, tag = 'scratch operand']
  %s0 = inlined_call_operand.hbm [shape: f32[2,8,128], index: 0, kind: input, shape index: {}]
  %s1 = inlined_call_operand.hbm [shape: f32[2,8,128], index: 1, kind: input, shape index: {}]
  %s2 = inlined_call_operand.hbm [shape: f32[128,128], index: 2, kind: input, shape index: {}]
  %s3 = inlined_call_operand.vmem [shape: f32[1,128], index: 3, kind: input, shape index: {}]
  %s4 = inlined_call_operand.hbm [shape: f32[128,128], index: 4, kind: input, shape index: {}]
  %s5 = inlined_call_operand.vmem [shape: f32[1,128], index: 5, kind: input, shape index: {}]
  %s6 = inlined_call_operand.hbm [shape: f32[2,8,8,128], index: 6, kind: output, shape index: {}]
  %s7 = sld [smem:[#allocation0]]
  $region77: #{tpu_custom_call.1} parent=0
    _
  %s9 = ssub.s32 1, %s7
  %s10 = scalar_select 0, %s9, %s7
  $region1: #{tpu_custom_call.1} parent=0
    #allocation3 [shape = 'u8[8192]{0}', space=vmem, size = 0x2000, scoped, tag = 'input window, operand 0']
    #allocation4 [shape = 's32[2]{0}', space=sflag, size = 0x8, scoped, tag = 'scoped memory for tpu_custom_call.1']
    #allocation5 [shape = 's32[2]{0}', space=sflag, size = 0x8, scoped, tag = 'scoped memory for tpu_custom_call.1']
    #allocation6 [shape = 'u8[8192]{0}', space=vmem, size = 0x2000, scoped, tag = 'input window, operand 1']
    #allocation7 [shape = 's32[2]{0}', space=sflag, size = 0x8, scoped, tag = 'scoped memory for tpu_custom_call.1']
    #allocation8 [shape = 'u8[65536]{0}', space=vmem, size = 0x10000, scoped, tag = 'input window, operand 2, single buffered']
    #allocation9 [shape = 'u8[65536]{0}', space=vmem, size = 0x10000, scoped, tag = 'input window, operand 4, single buffered']
    #allocation10 [shape = 's32[1]{0}', space=sflag, size = 0x4, scoped, tag = 'scoped memory for tpu_custom_call.1']
    #allocation11 [shape = 'u8[65536]{0}', space=vmem, size = 0x10000, scoped, tag = 'output window, operand 0']
    %11 = vsyncpa [#allocation4], 0
    %s12 = scalar_lea.sflag [#allocation4], 1
    %13 = vsyncpa %s12, 0
    %14 = vsyncpa [#allocation7], 0
    %s15 = scalar_lea.sflag [#allocation7], 1
    %16 = vsyncpa %s15, 0
    %17 = vsyncpa [#allocation10], 0
    %18 = vsyncpa [#allocation5], 0
    %s19 = scalar_lea.sflag [#allocation5], 1
    %20 = vsyncpa %s19, 0
    loop: start=0, step=1, limit=4
    $region2: #{tpu_custom_call.1} parent=1 // loop_pre_header
      _
    $region3: #{tpu_custom_call.1} parent=1 // loop_header
      %s22 = sphi 0, %s26
      %p23 = scmp.ge.s32.totalorder %s22, 4
      %s29 = sphi 0, %s48
      %s30 = sphi 0, %s44
      %s31 = sphi 0, %s40
      %s32 = sphi 0, %s29
      %s33 = sphi 0, %s30
      %s34 = sphi 0, %s31
      %s35 = sphi 0, %s32
      %s36 = sphi 0, %s33
      %s37 = sphi 0, %s34
      %s53 = sphi 0, %s55
      %s56 = sphi 0, %s53
      %s57 = sphi 0, %s56
      %s73 = sphi 0, %s57
      %s79 = sphi 0, %s81
      %s82 = sphi 0, %s79
      %s83 = sphi 0, %s82
      %s99 = sphi 0, %s83
      %s103 = sphi 0, %s103
      %s105 = sphi 0, %s103
      %s106 = sphi 0, %s105
      %s120 = sphi 0, %s106
      %s124 = sphi 0, %s124
      %s126 = sphi 0, %s124
      %s127 = sphi 0, %s126
      %s141 = sphi 0, %s127
      %s147 = sphi 0, %s149
      %s150 = sphi 0, %s147
      %s151 = sphi 0, %s150
      %s167 = sphi 0, %s151
      %s173 = sphi 0, %s175
      %s176 = sphi 0, %s173
      %s177 = sphi 0, %s176
      %s193 = sphi 0, %s177
      %s203 = sphi 0, %s205
      %s206 = sphi 0, %s203
      %s207 = sphi 0, %s206
      %s223 = sphi 0, %s207
    $region4: #{tpu_custom_call.1} parent=1 // loop_header_branch
      %25 = sbr.rel (%p23) target = $region8
    $region5: #{tpu_custom_call.1} parent=1 // loop_body
      %s27 = ssub.s32 %s22, 1
      %s28 = ssub.s32 %s22, 2
      %s38 = sadd.s32 1, %s31
      %p39 = scmp.ge.s32.totalorder %s38, 1
      %s40 = scalar_select %p39, 0, %s38
      %s41 = sadd.s32 1, %s30
      %s42 = scalar_select %p39, %s41, %s30
      %p43 = scmp.ge.s32.totalorder %s42, 1
      %s44 = scalar_select %p43, 0, %s42
      %s45 = sadd.s32 1, %s29
      %s46 = scalar_select %p43, %s45, %s29
      %p47 = scmp.ge.s32.totalorder %s46, 2
      %s48 = scalar_select %p47, 0, %s46
      %s49 = ssub.s32 %s29, %s48
      %s50 = ssub.s32 %s30, %s44
      %s51 = sor.u32 %s49, %s50
      %p52 = scmp.eq.s32.totalorder %s51, 0
      %s54 = sadd.s32 %s53, 1
      %s55 = scalar_select %p52, %s53, %s54
      %p58 = pneg %p52
      %p59 = scmp.eq.s32.totalorder %s22, 1
      %p60 = por %p58, %p59
      %p61 = scmp.ne.s32.totalorder %s53, %s56
      %p62 = scmp.eq.s32.totalorder %s22, 0
      %p63 = por %p61, %p62
      %p64 = scmp.ne.s32.totalorder %s53, %s56
      %p65 = scmp.eq.s32.totalorder %s27, 1
      %p66 = por %p64, %p65
      %p67 = scmp.ne.s32.totalorder %s56, %s57
      %p68 = scmp.eq.s32.totalorder %s27, 0
      %p69 = por %p67, %p68
      %p70 = scmp.ne.s32.totalorder %s56, %s57
      %p71 = scmp.eq.s32.totalorder %s28, 1
      %p72 = por %p70, %p71
      %p74 = scmp.ne.s32.totalorder %s57, %s73
      %p75 = scmp.eq.s32.totalorder %s28, 0
      %p76 = por %p74, %p75
      %s77 = ssub.s32 %s29, %s48
      %p78 = scmp.eq.s32.totalorder %s77, 0
      %s80 = sadd.s32 %s79, 1
      %s81 = scalar_select %p78, %s79, %s80
      %p84 = pneg %p78
      %p85 = scmp.eq.s32.totalorder %s22, 1
      %p86 = por %p84, %p85
      %p87 = scmp.ne.s32.totalorder %s79, %s82
      %p88 = scmp.eq.s32.totalorder %s22, 0
      %p89 = por %p87, %p88
      %p90 = scmp.ne.s32.totalorder %s79, %s82
      %p91 = scmp.eq.s32.totalorder %s27, 1
      %p92 = por %p90, %p91
      %p93 = scmp.ne.s32.totalorder %s82, %s83
      %p94 = scmp.eq.s32.totalorder %s27, 0
      %p95 = por %p93, %p94
      %p96 = scmp.ne.s32.totalorder %s82, %s83
      %p97 = scmp.eq.s32.totalorder %s28, 1
      %p98 = por %p96, %p97
      %p100 = scmp.ne.s32.totalorder %s83, %s99
      %p101 = scmp.eq.s32.totalorder %s28, 0
      %p102 = por %p100, %p101
      %s104 = sadd.s32 %s103, 1
      %p107 = scmp.eq.s32.totalorder %s22, 1
      %p108 = scmp.ne.s32.totalorder %s103, %s105
      %p109 = scmp.eq.s32.totalorder %s22, 0
      %p110 = por %p108, %p109
      %p111 = scmp.ne.s32.totalorder %s103, %s105
      %p112 = scmp.eq.s32.totalorder %s27, 1
      %p113 = por %p111, %p112
      %p114 = scmp.ne.s32.totalorder %s105, %s106
      %p115 = scmp.eq.s32.totalorder %s27, 0
      %p116 = por %p114, %p115
      %p117 = scmp.ne.s32.totalorder %s105, %s106
      %p118 = scmp.eq.s32.totalorder %s28, 1
      %p119 = por %p117, %p118
      %p121 = scmp.ne.s32.totalorder %s106, %s120
      %p122 = scmp.eq.s32.totalorder %s28, 0
      %p123 = por %p121, %p122
      %s125 = sadd.s32 %s124, 1
      %p128 = scmp.eq.s32.totalorder %s22, 1
      %p129 = scmp.ne.s32.totalorder %s124, %s126
      %p130 = scmp.eq.s32.totalorder %s22, 0
      %p131 = por %p129, %p130
      %p132 = scmp.ne.s32.totalorder %s124, %s126
      %p133 = scmp.eq.s32.totalorder %s27, 1
      %p134 = por %p132, %p133
      %p135 = scmp.ne.s32.totalorder %s126, %s127
      %p136 = scmp.eq.s32.totalorder %s27, 0
      %p137 = por %p135, %p136
      %p138 = scmp.ne.s32.totalorder %s126, %s127
      %p139 = scmp.eq.s32.totalorder %s28, 1
      %p140 = por %p138, %p139
      %p142 = scmp.ne.s32.totalorder %s127, %s141
      %p143 = scmp.eq.s32.totalorder %s28, 0
      %p144 = por %p142, %p143
      %s145 = ssub.s32 %s31, %s40
      %p146 = scmp.eq.s32.totalorder %s145, 0
      %s148 = sadd.s32 %s147, 1
      %s149 = scalar_select %p146, %s147, %s148
      %p152 = pneg %p146
      %p153 = scmp.eq.s32.totalorder %s22, 1
      %p154 = por %p152, %p153
      %p155 = scmp.ne.s32.totalorder %s147, %s150
      %p156 = scmp.eq.s32.totalorder %s22, 0
      %p157 = por %p155, %p156
      %p158 = scmp.ne.s32.totalorder %s147, %s150
      %p159 = scmp.eq.s32.totalorder %s27, 1
      %p160 = por %p158, %p159
      %p161 = scmp.ne.s32.totalorder %s150, %s151
      %p162 = scmp.eq.s32.totalorder %s27, 0
      %p163 = por %p161, %p162
      %p164 = scmp.ne.s32.totalorder %s150, %s151
      %p165 = scmp.eq.s32.totalorder %s28, 1
      %p166 = por %p164, %p165
      %p168 = scmp.ne.s32.totalorder %s151, %s167
      %p169 = scmp.eq.s32.totalorder %s28, 0
      %p170 = por %p168, %p169
      %s171 = ssub.s32 %s31, %s40
      %p172 = scmp.eq.s32.totalorder %s171, 0
      %s174 = sadd.s32 %s173, 1
      %s175 = scalar_select %p172, %s173, %s174
      %p178 = pneg %p172
      %p179 = scmp.eq.s32.totalorder %s22, 1
      %p180 = por %p178, %p179
      %p181 = scmp.ne.s32.totalorder %s173, %s176
      %p182 = scmp.eq.s32.totalorder %s22, 0
      %p183 = por %p181, %p182
      %p184 = scmp.ne.s32.totalorder %s173, %s176
      %p185 = scmp.eq.s32.totalorder %s27, 1
      %p186 = por %p184, %p185
      %p187 = scmp.ne.s32.totalorder %s176, %s177
      %p188 = scmp.eq.s32.totalorder %s27, 0
      %p189 = por %p187, %p188
      %p190 = scmp.ne.s32.totalorder %s176, %s177
      %p191 = scmp.eq.s32.totalorder %s28, 1
      %p192 = por %p190, %p191
      %p194 = scmp.ne.s32.totalorder %s177, %s193
      %p195 = scmp.eq.s32.totalorder %s28, 0
      %p196 = por %p194, %p195
      %s197 = ssub.s32 %s29, %s48
      %s198 = ssub.s32 %s30, %s44
      %s199 = sor.u32 %s197, %s198
      %s200 = ssub.s32 %s31, %s40
      %s201 = sor.u32 %s199, %s200
      %p202 = scmp.eq.s32.totalorder %s201, 0
      %s204 = sadd.s32 %s203, 1
      %s205 = scalar_select %p202, %s203, %s204
      %p208 = pneg %p202
      %p209 = scmp.eq.s32.totalorder %s22, 1
      %p210 = por %p208, %p209
      %p211 = scmp.ne.s32.totalorder %s203, %s206
      %p212 = scmp.eq.s32.totalorder %s22, 0
      %p213 = por %p211, %p212
      %p214 = scmp.ne.s32.totalorder %s203, %s206
      %p215 = scmp.eq.s32.totalorder %s27, 1
      %p216 = por %p214, %p215
      %p217 = scmp.ne.s32.totalorder %s206, %s207
      %p218 = scmp.eq.s32.totalorder %s27, 0
      %p219 = por %p217, %p218
      %p220 = scmp.ne.s32.totalorder %s206, %s207
      %p221 = scmp.eq.s32.totalorder %s28, 1
      %p222 = por %p220, %p221
      %p224 = scmp.ne.s32.totalorder %s207, %s223
      %p225 = scmp.eq.s32.totalorder %s28, 0
      %p226 = por %p224, %p225
      %p227 = scmp.le.s32.totalorder 1, %s22
      %p228 = scmp.lt.s32.totalorder %s22, 3
      %p229 = pnand %p227, %p228
      %p230 = pneg %p229
      // Predicated region
      $region9: #{tpu_custom_call.1} parent=5 // pred_check
        _
      $region10: #{tpu_custom_call.1} parent=5 // pred_check_branch
        %232 = sbr.rel (%p229) target = $region12
      $region11: #{tpu_custom_call.1} parent=5 // pred_region
        %s233 = ssub.s32 %s22, 1
        // Predicated region
        $region13: #{tpu_custom_call.1} parent=11 // pred_check
          %p234 = pneg %p116
        $region14: #{tpu_custom_call.1} parent=11 // pred_check_branch
          %236 = sbr.rel (%p234) target = $region16
        $region15: #{tpu_custom_call.1} parent=11 // pred_region
          %s238 = ssub.s32 2048, 2048
          %239 = vsyncadd [#allocation7], %s238
          %s240 = sshll.u32 [#allocation8], 4
          %s241 = int_to_ptr.vmem [resolvable:$true] %s240
          %246 = dma.hbm_to_vmem [thread:$0]  %s2, 2048, %s241, [#allocation7], 128, 128, 8
        $region16: #{tpu_custom_call.1} parent=11 // pred_fallthru
          _
        // Predicated region
        $region17: #{tpu_custom_call.1} parent=11 // pred_check
          %p247 = pneg %p137
        $region18: #{tpu_custom_call.1} parent=11 // pred_check_branch
          %249 = sbr.rel (%p247) target = $region20
        $region19: #{tpu_custom_call.1} parent=11 // pred_region
          _
        $region20: #{tpu_custom_call.1} parent=11 // pred_fallthru
          _
        // Predicated region
        $region21: #{tpu_custom_call.1} parent=11 // pred_check
          %p250 = pneg %p163
        $region22: #{tpu_custom_call.1} parent=11 // pred_check_branch
          %252 = sbr.rel (%p250) target = $region24
        $region23: #{tpu_custom_call.1} parent=11 // pred_region
          %s254 = ssub.s32 2048, 2048
          %255 = vsyncadd [#allocation10], %s254
          %s256 = smul.addr %s34, 128
          %s257 = scalar_lea.hbm %s4, %s256
          %s258 = sshll.u32 [#allocation9], 4
          %s259 = int_to_ptr.vmem [resolvable:$true] %s258
          %264 = dma.hbm_to_vmem [thread:$0]  %s257, 2048, %s259, [#allocation10], 128, 128, 8
        $region24: #{tpu_custom_call.1} parent=11 // pred_fallthru
          _
        // Predicated region
        $region25: #{tpu_custom_call.1} parent=11 // pred_check
          %p265 = pneg %p189
        $region26: #{tpu_custom_call.1} parent=11 // pred_check_branch
          %267 = sbr.rel (%p265) target = $region28
        $region27: #{tpu_custom_call.1} parent=11 // pred_region
          %p268 = scmp.lt.s32.totalorder %s34, 0
          %s269 = scalar_select %p268, %s34, 0
          %s270 = scalar_lea.vmem %s5, %s269
        $region28: #{tpu_custom_call.1} parent=11 // pred_fallthru
          _
      $region12: #{tpu_custom_call.1} parent=5 // pred_fallthru
        _
      %p271 = scmp.lt.s32.totalorder %s22, 2
      // Predicated region
      $region29: #{tpu_custom_call.1} parent=5 // pred_check
        %p272 = pneg %p271
      $region30: #{tpu_custom_call.1} parent=5 // pred_check_branch
        %274 = sbr.rel (%p272) target = $region32
      $region31: #{tpu_custom_call.1} parent=5 // pred_region
        // Predicated region
        $region33: #{tpu_custom_call.1} parent=31 // pred_check
          %p275 = pneg %p63
        $region34: #{tpu_custom_call.1} parent=31 // pred_check_branch
          %277 = sbr.rel (%p275) target = $region36
        $region35: #{tpu_custom_call.1} parent=31 // pred_region
          %s278 = sand.u32 %s53, 1
          %s279 = scalar_lea.sflag [#allocation4], %s278
          %s280 = sand.u32 %s53, 1
          %s281 = smul.addr %s280, 8
          %s282 = scalar_lea.vmem [#allocation3], %s281
          %s284 = ssub.s32 128, 128
          %285 = vsyncadd %s279, %s284
          %s286 = sadd.s32 %s30, %s29
          %s287 = smul.addr %s286, 128
          %s288 = scalar_lea.hbm %s0, %s287
          %s290 = sshll.u32 %s282, 4
          %s291 = int_to_ptr.vmem [resolvable:$true] %s290
          %293 = dma.hbm_to_vmem [thread:$0]  %s288, 128, %s291, %s279
        $region36: #{tpu_custom_call.1} parent=31 // pred_fallthru
          _
        // Predicated region
        $region37: #{tpu_custom_call.1} parent=31 // pred_check
          %p294 = pneg %p89
        $region38: #{tpu_custom_call.1} parent=31 // pred_check_branch
          %296 = sbr.rel (%p294) target = $region40
        $region39: #{tpu_custom_call.1} parent=31 // pred_region
          %s297 = sand.u32 %s22, 1
          %s298 = scalar_lea.sflag [#allocation7], %s297
          %s299 = sand.u32 %s79, 1
          %s300 = smul.addr %s299, 8
          %s301 = scalar_lea.vmem [#allocation6], %s300
          %s303 = ssub.s32 128, 128
          %304 = vsyncadd %s298, %s303
          %s305 = smul.addr %s29, 128
          %s306 = scalar_lea.hbm %s1, %s305
          %s308 = sshll.u32 %s301, 4
          %s309 = int_to_ptr.vmem [resolvable:$true] %s308
          %311 = dma.hbm_to_vmem [thread:$0]  %s306, 128, %s309, %s298
        $region40: #{tpu_custom_call.1} parent=31 // pred_fallthru
          _
      $region32: #{tpu_custom_call.1} parent=5 // pred_fallthru
        _
      %p312 = scmp.le.s32.totalorder 1, %s22
      %p313 = scmp.lt.s32.totalorder %s22, 3
      %p314 = pnand %p312, %p313
      %p315 = pneg %p314
      // Predicated region
      $region41: #{tpu_custom_call.1} parent=5 // pred_check
        _
      $region42: #{tpu_custom_call.1} parent=5 // pred_check_branch
        %317 = sbr.rel (%p314) target = $region44
      $region43: #{tpu_custom_call.1} parent=5 // pred_region
        %s318 = ssub.s32 %s22, 1
        %s319 = sand.u32 %s56, 1
        %s320 = scalar_lea.sflag [#allocation4], %s319
        %s321 = sand.u32 %s56, 1
        %s322 = smul.addr %s321, 8
        %s323 = scalar_lea.vmem [#allocation3], %s322
        // Predicated region
        $region45: #{tpu_custom_call.1} parent=43 // pred_check
          %p324 = pneg %p69
        $region46: #{tpu_custom_call.1} parent=43 // pred_check_branch
          %326 = sbr.rel (%p324) target = $region48
        $region47: #{tpu_custom_call.1} parent=43 // pred_region
          %327 = dma.done %s320, 128
        $region48: #{tpu_custom_call.1} parent=43 // pred_fallthru
          _
        %s328 = sand.u32 %s27, 1
        %s329 = scalar_lea.sflag [#allocation7], %s328
        %s330 = sand.u32 %s82, 1
        %s331 = smul.addr %s330, 8
        %s332 = scalar_lea.vmem [#allocation6], %s331
        // Predicated region
        $region49: #{tpu_custom_call.1} parent=43 // pred_check
          %p333 = pneg %p95
        $region50: #{tpu_custom_call.1} parent=43 // pred_check_branch
          %335 = sbr.rel (%p333) target = $region52
        $region51: #{tpu_custom_call.1} parent=43 // pred_region
          %336 = dma.done %s329, 128
        $region52: #{tpu_custom_call.1} parent=43 // pred_fallthru
          _
        // Predicated region
        $region53: #{tpu_custom_call.1} parent=43 // pred_check
          %p337 = pneg %p116
        $region54: #{tpu_custom_call.1} parent=43 // pred_check_branch
          %339 = sbr.rel (%p337) target = $region56
        $region55: #{tpu_custom_call.1} parent=43 // pred_region
          %340 = dma.done [#allocation7], 2048
        $region56: #{tpu_custom_call.1} parent=43 // pred_fallthru
          _
        // Predicated region
        $region57: #{tpu_custom_call.1} parent=43 // pred_check
          %p341 = pneg %p163
        $region58: #{tpu_custom_call.1} parent=43 // pred_check_branch
          %343 = sbr.rel (%p341) target = $region60
        $region59: #{tpu_custom_call.1} parent=43 // pred_region
          %344 = dma.done [#allocation10], 2048
        $region60: #{tpu_custom_call.1} parent=43 // pred_fallthru
          _
        %s345 = sand.u32 %s56, 1
        %s346 = scalar_lea.sflag [#allocation4], %s345
        %s347 = sand.u32 %s56, 1
        %s348 = smul.addr %s347, 8
        %s349 = scalar_lea.vmem [#allocation3], %s348
        %p350 = pneg %p69
        %p351 = pneg %p66
        %s352 = sand.u32 %s27, 1
        %s353 = scalar_lea.sflag [#allocation7], %s352
        %s354 = sand.u32 %s82, 1
        %s355 = smul.addr %s354, 8
        %s356 = scalar_lea.vmem [#allocation6], %s355
        %p357 = pneg %p95
        %p358 = pneg %p92
        %p359 = pneg %p116
        %p360 = pneg %p113
        %p361 = pneg %p137
        %p362 = pneg %p134
        %p363 = pneg %p163
        %p364 = pneg %p160
        %p365 = scmp.lt.s32.totalorder %s34, 0
        %s366 = scalar_select %p365, %s34, 0
        %s367 = scalar_lea.vmem %s5, %s366
        %p368 = pneg %p189
        %p369 = pneg %p186
        %p370 = pneg %p219
        %p371 = pneg %p216
        %s372 = sand.u32 %s206, 1
        %s373 = scalar_lea.sflag [#allocation5], %s372
        %s374 = sand.u32 %s206, 1
        %s375 = smul.addr %s374, 64
        %s376 = scalar_lea.vmem [#allocation11], %s375
        %p377 = scmp.lt.s32.totalorder %s34, 0
        %s378 = scalar_select %p377, %s34, 0
        %s379 = scalar_lea.vmem %s5, %s378
        %s380 = smul.u32 8, %s33
        %p381 = scmp.eq.s32.totalorder %s34, 0
        // Predicated region
        $region61: #{tpu_custom_call.1} parent=43 // pred_check
          %p382 = pneg %p381
        $region62: #{tpu_custom_call.1} parent=43 // pred_check_branch
          %384 = sbr.rel (%p382) target = $region64
        $region63: #{tpu_custom_call.1} parent=43 // pred_region
          %v385 = vld [vmem:[%s323] sm:$0xff]
          %v386 = vld [vmem:[#allocation8] sm:$0xff]
          %v387 = vld [vmem:[#allocation8 + $0x8] sm:$0xff]
          %v388 = vld [vmem:[#allocation8 + $0x10] sm:$0xff]
          %v389 = vld [vmem:[#allocation8 + $0x18] sm:$0xff]
          %v390 = vld [vmem:[#allocation8 + $0x20] sm:$0xff]
          %v391 = vld [vmem:[#allocation8 + $0x28] sm:$0xff]
          %v392 = vld [vmem:[#allocation8 + $0x30] sm:$0xff]
          %v393 = vld [vmem:[#allocation8 + $0x38] sm:$0xff]
          %v394 = vld [vmem:[#allocation8 + $0x40] sm:$0xff]
          %v395 = vld [vmem:[#allocation8 + $0x48] sm:$0xff]
          %v396 = vld [vmem:[#allocation8 + $0x50] sm:$0xff]
          %v397 = vld [vmem:[#allocation8 + $0x58] sm:$0xff]
          %v398 = vld [vmem:[#allocation8 + $0x60] sm:$0xff]
          %v399 = vld [vmem:[#allocation8 + $0x68] sm:$0xff]
          %v400 = vld [vmem:[#allocation8 + $0x70] sm:$0xff]
          %v401 = vld [vmem:[#allocation8 + $0x78] sm:$0xff]
          %v402 = vld [vmem:[%s3] sm:$0x1]
          %v404 = vlaneseq
          %v405 = vshrl.u32 %v404, 7
          %v406 = vsub.s32 0, %v405
          %v407 = vrot.slane %v402, %v406
          %409 = vmatprep.subr.mxu0 0.0
          %410 = vmatpush1.msra.mxu0 %v386
          %411 = vmatprep.subr.mxu0 0.0
          %412 = vmatpush1.msra.mxu0 %v387
          %413 = vmatprep.subr.mxu0 0.0
          %414 = vmatpush1.msra.mxu0 %v388
          %415 = vmatprep.subr.mxu0 0.0
          %416 = vmatpush1.msra.mxu0 %v389
          %417 = vmatprep.subr.mxu0 0.0
          %418 = vmatpush1.msra.mxu0 %v390
          %419 = vmatprep.subr.mxu0 0.0
          %420 = vmatpush1.msra.mxu0 %v391
          %421 = vmatprep.subr.mxu0 0.0
          %422 = vmatpush1.msra.mxu0 %v392
          %423 = vmatprep.subr.mxu0 0.0
          %424 = vmatpush1.msra.mxu0 %v393
          %425 = vmatprep.subr.mxu0 0.0
          %426 = vmatpush1.msra.mxu0 %v394
          %427 = vmatprep.subr.mxu0 0.0
          %428 = vmatpush1.msra.mxu0 %v395
          %429 = vmatprep.subr.mxu0 0.0
          %430 = vmatpush1.msra.mxu0 %v396
          %431 = vmatprep.subr.mxu0 0.0
          %432 = vmatpush1.msra.mxu0 %v397
          %433 = vmatprep.subr.mxu0 0.0
          %434 = vmatpush1.msra.mxu0 %v398
          %435 = vmatprep.subr.mxu0 0.0
          %436 = vmatpush1.msra.mxu0 %v399
          %437 = vmatprep.subr.mxu0 0.0
          %438 = vmatpush1.msra.mxu0 %v400
          %439 = vmatprep.subr.mxu0 0.0
          %440 = vmatpush1.msra.mxu0 %v401
          %441 = vmatprep.subr.mxu0 0.0
          %442 = vmatpush1.msra.mxu0 0.0
          %443 = vmatprep.subr.mxu0 0.0
          %444 = vmatpush1.msra.mxu0 0.0
          %445 = vmatprep.subr.mxu0 0.0
          %446 = vmatpush1.msra.mxu0 0.0
          %447 = vmatprep.subr.mxu0 0.0
          %448 = vmatpush1.msra.mxu0 0.0
          %449 = vmatprep.subr.mxu0 0.0
          %450 = vmatpush1.msra.mxu0 0.0
          %451 = vmatprep.subr.mxu0 0.0
          %452 = vmatpush1.msra.mxu0 0.0
          %453 = vmatprep.subr.mxu0 0.0
          %454 = vmatpush1.msra.mxu0 0.0
          %455 = vmatprep.subr.mxu0 0.0
          %456 = vmatpush1.msra.mxu0 0.0
          %457 = vmatprep.subr.mxu0 0.0
          %458 = vmatpush1.msra.mxu0 0.0
          %459 = vmatprep.subr.mxu0 0.0
          %460 = vmatpush1.msra.mxu0 0.0
          %461 = vmatprep.subr.mxu0 0.0
          %462 = vmatpush1.msra.mxu0 0.0
          %463 = vmatprep.subr.mxu0 0.0
          %464 = vmatpush1.msra.mxu0 0.0
          %465 = vmatprep.subr.mxu0 0.0
          %466 = vmatpush1.msra.mxu0 0.0
          %467 = vmatprep.subr.mxu0 0.0
          %468 = vmatpush1.msra.mxu0 0.0
          %469 = vmatprep.subr.mxu0 0.0
          %470 = vmatpush1.msra.mxu0 0.0
          %471 = vmatprep.subr.mxu0 0.0
          %472 = vmatpush1.msra.mxu0 0.0
          %473 = vmatprep.mubr.f32.mxu0 0.0
          %474 = vmatmul.mubr.f32.gmra.mrb[0].mxu0 %v385
          %v475 = vpop.f32.mrb[0].mxu0
          %v476 = vadd.f32 %v407, %v475
          %v477 = vpop.f32.mrb[0].mxu0
          %478 = vdwg.mxu0
          %v479 = vld [vmem:[%s332] sm:$0xff]
          %v481 = vcombine.high %v476, %v476
          %v483 = vunpack.c.l.s4 1966171168
          %v484 = vunpack.c.0.s8 %v483
          %v485 = vlaneseq
          %v486 = vshrl.u32 %v485, 7
          %v487 = vsub.s32 %v484, %v486
          %v488 = vrot.slane %v476, %v487
          %v490 = vunpack.c.l.s4 1966171168
          %v491 = vunpack.c.0.s8 %v490
          %v492 = vlaneseq
          %v493 = vshrl.u32 %v492, 7
          %v494 = vsub.s32 %v491, %v493
          %v495 = vrot.slane %v481, %v494
          %v496 = vcombine.high %v488, %v488
          %v497 = vcombine.high %v495, %v495
          %v499 = vunpack.c.l.s4 1966171168
          %v500 = vunpack.c.0.s8 %v499
          %v501 = vlaneseq
          %v502 = vshrl.u32 %v501, 7
          %v503 = vsub.s32 %v500, %v502
          %v504 = vrot.slane %v488, %v503
          %v506 = vunpack.c.l.s4 1966171168
          %v507 = vunpack.c.0.s8 %v506
          %v508 = vlaneseq
          %v509 = vshrl.u32 %v508, 7
          %v510 = vsub.s32 %v507, %v509
          %v511 = vrot.slane %v495, %v510
          %v513 = vunpack.c.l.s4 1966171168
          %v514 = vunpack.c.0.s8 %v513
          %v515 = vlaneseq
          %v516 = vshrl.u32 %v515, 7
          %v517 = vsub.s32 %v514, %v516
          %v518 = vrot.slane %v496, %v517
          %v520 = vunpack.c.l.s4 1966171168
          %v521 = vunpack.c.0.s8 %v520
          %v522 = vlaneseq
          %v523 = vshrl.u32 %v522, 7
          %v524 = vsub.s32 %v521, %v523
          %v525 = vrot.slane %v497, %v524
          %v526 = vcombine.high %v504, %v504
          %v527 = vcombine.high %v511, %v511
          %v528 = vcombine.high %v518, %v518
          %v529 = vcombine.high %v525, %v525
          %v530 = vlaneseq
          %v531 = vshrl.u32 %v530, 7
          %v532 = vsub.s32 0, %v531
          %v533 = vrot.slane %v504, %v532
          %v534 = vlaneseq
          %v535 = vshrl.u32 %v534, 7
          %v536 = vsub.s32 0, %v535
          %v537 = vrot.slane %v518, %v536
          %v538 = vlaneseq
          %v539 = vshrl.u32 %v538, 7
          %v540 = vsub.s32 0, %v539
          %v541 = vrot.slane %v526, %v540
          %v542 = vlaneseq
          %v543 = vshrl.u32 %v542, 7
          %v544 = vsub.s32 0, %v543
          %v545 = vrot.slane %v528, %v544
          %v546 = vlaneseq
          %v547 = vshrl.u32 %v546, 7
          %v548 = vsub.s32 0, %v547
          %v549 = vrot.slane %v511, %v548
          %v550 = vlaneseq
          %v551 = vshrl.u32 %v550, 7
          %v552 = vsub.s32 0, %v551
          %v553 = vrot.slane %v525, %v552
          %v554 = vlaneseq
          %v555 = vshrl.u32 %v554, 7
          %v556 = vsub.s32 0, %v555
          %v557 = vrot.slane %v527, %v556
          %v558 = vlaneseq
          %v559 = vshrl.u32 %v558, 7
          %v560 = vsub.s32 0, %v559
          %v561 = vrot.slane %v529, %v560
          %v570 = vadd.f32 %v533, %v479
          %v571 = vadd.f32 %v537, %v479
          %v572 = vadd.f32 %v541, %v479
          %v573 = vadd.f32 %v545, %v479
          %v574 = vadd.f32 %v549, %v479
          %v575 = vadd.f32 %v553, %v479
          %v576 = vadd.f32 %v557, %v479
          %v577 = vadd.f32 %v561, %v479
          %v578 = vtanh.pop %v570
          %v579 = vtanh.pop %v571
          %v580 = vtanh.pop %v572
          %v581 = vtanh.pop %v573
          %v582 = vtanh.pop %v574
          %v583 = vtanh.pop %v575
          %v584 = vtanh.pop %v576
          %v585 = vtanh.pop %v577
          %586 = vst [vmem:[#allocation2] sm:$0xff] %v578
          %587 = vst [vmem:[#allocation2 + $0x8] sm:$0xff] %v579
          %588 = vst [vmem:[#allocation2 + $0x10] sm:$0xff] %v580
          %589 = vst [vmem:[#allocation2 + $0x18] sm:$0xff] %v581
          %590 = vst [vmem:[#allocation2 + $0x20] sm:$0xff] %v582
          %591 = vst [vmem:[#allocation2 + $0x28] sm:$0xff] %v583
          %592 = vst [vmem:[#allocation2 + $0x30] sm:$0xff] %v584
          %593 = vst [vmem:[#allocation2 + $0x38] sm:$0xff] %v585
        $region64: #{tpu_custom_call.1} parent=43 // pred_fallthru
          _
        %v594 = vld [vmem:[#allocation2] sm:$0xff]
        %v595 = vld [vmem:[#allocation2 + $0x8] sm:$0xff]
        %v596 = vld [vmem:[#allocation2 + $0x10] sm:$0xff]
        %v597 = vld [vmem:[#allocation2 + $0x18] sm:$0xff]
        %v598 = vld [vmem:[#allocation2 + $0x20] sm:$0xff]
        %v599 = vld [vmem:[#allocation2 + $0x28] sm:$0xff]
        %v600 = vld [vmem:[#allocation2 + $0x30] sm:$0xff]
        %v601 = vld [vmem:[#allocation2 + $0x38] sm:$0xff]
        %v602 = vld [vmem:[#allocation9] sm:$0xff]
        %v603 = vld [vmem:[#allocation9 + $0x8] sm:$0xff]
        %v604 = vld [vmem:[#allocation9 + $0x10] sm:$0xff]
        %v605 = vld [vmem:[#allocation9 + $0x18] sm:$0xff]
        %v606 = vld [vmem:[#allocation9 + $0x20] sm:$0xff]
        %v607 = vld [vmem:[#allocation9 + $0x28] sm:$0xff]
        %v608 = vld [vmem:[#allocation9 + $0x30] sm:$0xff]
        %v609 = vld [vmem:[#allocation9 + $0x38] sm:$0xff]
        %v610 = vld [vmem:[#allocation9 + $0x40] sm:$0xff]
        %v611 = vld [vmem:[#allocation9 + $0x48] sm:$0xff]
        %v612 = vld [vmem:[#allocation9 + $0x50] sm:$0xff]
        %v613 = vld [vmem:[#allocation9 + $0x58] sm:$0xff]
        %v614 = vld [vmem:[#allocation9 + $0x60] sm:$0xff]
        %v615 = vld [vmem:[#allocation9 + $0x68] sm:$0xff]
        %v616 = vld [vmem:[#allocation9 + $0x70] sm:$0xff]
        %v617 = vld [vmem:[#allocation9 + $0x78] sm:$0xff]
        %v618 = vld [vmem:[%s379] sm:$0x1]
        %v620 = vlaneseq
        %v621 = vshrl.u32 %v620, 7
        %v622 = vsub.s32 0, %v621
        %v623 = vrot.slane %v618, %v622
        %625 = vmatprep.subr.mxu0 0.0
        %626 = vmatpush1.msra.mxu0 %v602
        %627 = vmatprep.subr.mxu0 0.0
        %628 = vmatpush1.msra.mxu0 %v603
        %629 = vmatprep.subr.mxu0 0.0
        %630 = vmatpush1.msra.mxu0 %v604
        %631 = vmatprep.subr.mxu0 0.0
        %632 = vmatpush1.msra.mxu0 %v605
        %633 = vmatprep.subr.mxu0 0.0
        %634 = vmatpush1.msra.mxu0 %v606
        %635 = vmatprep.subr.mxu0 0.0
        %636 = vmatpush1.msra.mxu0 %v607
        %637 = vmatprep.subr.mxu0 0.0
        %638 = vmatpush1.msra.mxu0 %v608
        %639 = vmatprep.subr.mxu0 0.0
        %640 = vmatpush1.msra.mxu0 %v609
        %641 = vmatprep.subr.mxu0 0.0
        %642 = vmatpush1.msra.mxu0 %v610
        %643 = vmatprep.subr.mxu0 0.0
        %644 = vmatpush1.msra.mxu0 %v611
        %645 = vmatprep.subr.mxu0 0.0
        %646 = vmatpush1.msra.mxu0 %v612
        %647 = vmatprep.subr.mxu0 0.0
        %648 = vmatpush1.msra.mxu0 %v613
        %649 = vmatprep.subr.mxu0 0.0
        %650 = vmatpush1.msra.mxu0 %v614
        %651 = vmatprep.subr.mxu0 0.0
        %652 = vmatpush1.msra.mxu0 %v615
        %653 = vmatprep.subr.mxu0 0.0
        %654 = vmatpush1.msra.mxu0 %v616
        %655 = vmatprep.subr.mxu0 0.0
        %656 = vmatpush1.msra.mxu0 %v617
        %657 = vmatprep.subr.mxu0 0.0
        %658 = vmatpush1.msra.mxu0 0.0
        %659 = vmatprep.subr.mxu0 0.0
        %660 = vmatpush1.msra.mxu0 0.0
        %661 = vmatprep.subr.mxu0 0.0
        %662 = vmatpush1.msra.mxu0 0.0
        %663 = vmatprep.subr.mxu0 0.0
        %664 = vmatpush1.msra.mxu0 0.0
        %665 = vmatprep.subr.mxu0 0.0
        %666 = vmatpush1.msra.mxu0 0.0
        %667 = vmatprep.subr.mxu0 0.0
        %668 = vmatpush1.msra.mxu0 0.0
        %669 = vmatprep.subr.mxu0 0.0
        %670 = vmatpush1.msra.mxu0 0.0
        %671 = vmatprep.subr.mxu0 0.0
        %672 = vmatpush1.msra.mxu0 0.0
        %673 = vmatprep.subr.mxu0 0.0
        %674 = vmatpush1.msra.mxu0 0.0
        %675 = vmatprep.subr.mxu0 0.0
        %676 = vmatpush1.msra.mxu0 0.0
        %677 = vmatprep.subr.mxu0 0.0
        %678 = vmatpush1.msra.mxu0 0.0
        %679 = vmatprep.subr.mxu0 0.0
        %680 = vmatpush1.msra.mxu0 0.0
        %681 = vmatprep.subr.mxu0 0.0
        %682 = vmatpush1.msra.mxu0 0.0
        %683 = vmatprep.subr.mxu0 0.0
        %684 = vmatpush1.msra.mxu0 0.0
        %685 = vmatprep.subr.mxu0 0.0
        %686 = vmatpush1.msra.mxu0 0.0
        %687 = vmatprep.subr.mxu0 0.0
        %688 = vmatpush1.msra.mxu0 0.0
        %689 = vmatprep.mubr.f32.mxu0 0.0
        %690 = vmatmul.mubr.f32.gmra.mrb[0].mxu0 %v594
        %v691 = vpop.f32.mrb[0].mxu0
        %v692 = vadd.f32 %v623, %v691
        %v693 = vpop.f32.mrb[0].mxu0
        %694 = vmatprep.mubr.f32.mxu0 0.0
        %695 = vmatmul.mubr.f32.gmra.mrb[0].mxu0 %v595
        %v696 = vpop.f32.mrb[0].mxu0
        %v697 = vadd.f32 %v623, %v696
        %v698 = vpop.f32.mrb[0].mxu0
        %699 = vmatprep.mubr.f32.mxu0 0.0
        %700 = vmatmul.mubr.f32.gmra.mrb[0].mxu0 %v596
        %v701 = vpop.f32.mrb[0].mxu0
        %v702 = vadd.f32 %v623, %v701
        %v703 = vpop.f32.mrb[0].mxu0
        %704 = vmatprep.mubr.f32.mxu0 0.0
        %705 = vmatmul.mubr.f32.gmra.mrb[0].mxu0 %v597
        %v706 = vpop.f32.mrb[0].mxu0
        %v707 = vadd.f32 %v623, %v706
        %v708 = vpop.f32.mrb[0].mxu0
        %709 = vmatprep.mubr.f32.mxu0 0.0
        %710 = vmatmul.mubr.f32.gmra.mrb[0].mxu0 %v598
        %v711 = vpop.f32.mrb[0].mxu0
        %v712 = vadd.f32 %v623, %v711
        %v713 = vpop.f32.mrb[0].mxu0
        %714 = vmatprep.mubr.f32.mxu0 0.0
        %715 = vmatmul.mubr.f32.gmra.mrb[0].mxu0 %v599
        %v716 = vpop.f32.mrb[0].mxu0
        %v717 = vadd.f32 %v623, %v716
        %v718 = vpop.f32.mrb[0].mxu0
        %719 = vmatprep.mubr.f32.mxu0 0.0
        %720 = vmatmul.mubr.f32.gmra.mrb[0].mxu0 %v600
        %v721 = vpop.f32.mrb[0].mxu0
        %v722 = vadd.f32 %v623, %v721
        %v723 = vpop.f32.mrb[0].mxu0
        %724 = vmatprep.mubr.f32.mxu0 0.0
        %725 = vmatmul.mubr.f32.gmra.mrb[0].mxu0 %v601
        %v726 = vpop.f32.mrb[0].mxu0
        %v727 = vadd.f32 %v623, %v726
        %v728 = vpop.f32.mrb[0].mxu0
        %729 = vdwg.mxu0
        %730 = vst [vmem:[%s376] sm:$0xff] %v692
        %731 = vst [vmem:[%s376 + $0x8] sm:$0xff] %v697
        %732 = vst [vmem:[%s376 + $0x10] sm:$0xff] %v702
        %733 = vst [vmem:[%s376 + $0x18] sm:$0xff] %v707
        %734 = vst [vmem:[%s376 + $0x20] sm:$0xff] %v712
        %735 = vst [vmem:[%s376 + $0x28] sm:$0xff] %v717
        %736 = vst [vmem:[%s376 + $0x30] sm:$0xff] %v722
        %737 = vst [vmem:[%s376 + $0x38] sm:$0xff] %v727
        %s738 = sand.u32 %s206, 1
        %s739 = scalar_lea.sflag [#allocation5], %s738
        %s740 = sand.u32 %s206, 1
        %s741 = smul.addr %s740, 64
        %s742 = scalar_lea.vmem [#allocation11], %s741
        // Predicated region
        $region65: #{tpu_custom_call.1} parent=43 // pred_check
          %p743 = pneg %p216
        $region66: #{tpu_custom_call.1} parent=43 // pred_check_branch
          %745 = sbr.rel (%p743) target = $region68
        $region67: #{tpu_custom_call.1} parent=43 // pred_region
          %s746 = smul.u32 8, %s33
          %s748 = ssub.s32 1024, 1024
          %749 = vsyncadd %s739, %s748
          %s750 = sadd.s32 %s34, %s746
          %s751 = smul.addr %s32, 8
          %s752 = sadd.s32 %s750, %s751
          %s753 = smul.addr %s752, 128
          %s754 = scalar_lea.hbm %s6, %s753
          %s755 = sshll.u32 %s742, 4
          %s756 = int_to_ptr.vmem [resolvable:$true] %s755
          %761 = dma.vmem_to_hbm [thread:$0]  %s756, 1024, %s754, %s739, 128, 128, 8
        $region68: #{tpu_custom_call.1} parent=43 // pred_fallthru
          _
      $region44: #{tpu_custom_call.1} parent=5 // pred_fallthru
        _
      %p762 = scmp.le.s32.totalorder 2, %s22
      // Predicated region
      $region69: #{tpu_custom_call.1} parent=5 // pred_check
        %p763 = pneg %p762
      $region70: #{tpu_custom_call.1} parent=5 // pred_check_branch
        %765 = sbr.rel (%p763) target = $region72
      $region71: #{tpu_custom_call.1} parent=5 // pred_region
        %s766 = ssub.s32 %s22, 2
        // Predicated region
        $region73: #{tpu_custom_call.1} parent=71 // pred_check
          %p767 = pneg %p222
        $region74: #{tpu_custom_call.1} parent=71 // pred_check_branch
          %769 = sbr.rel (%p767) target = $region76
        $region75: #{tpu_custom_call.1} parent=71 // pred_region
          %s770 = sand.u32 %s207, 1
          %s771 = scalar_lea.sflag [#allocation5], %s770
          %s772 = sand.u32 %s207, 1
          %s773 = smul.addr %s772, 64
          %s774 = scalar_lea.vmem [#allocation11], %s773
          %775 = dma.done %s771, 1024
        $region76: #{tpu_custom_call.1} parent=71 // pred_fallthru
          _
      $region72: #{tpu_custom_call.1} parent=5 // pred_fallthru
        _
    $region6: #{tpu_custom_call.1} parent=1 // loop_footer
      %s26 = sadd.s32 1, %s22
    $region7: #{tpu_custom_call.1} parent=1 // loop_footer_branch
      %21 = sbr.rel target = $region3
    $region8: #{tpu_custom_call.1} parent=1 // loop_exit
      _
    %776 = vsyncpa [#allocation4], 1
    %s777 = scalar_lea.sflag [#allocation4], 1
    %778 = vsyncpa %s777, 1
    %779 = vsyncpa [#allocation7], 1
    %s780 = scalar_lea.sflag [#allocation7], 1
    %781 = vsyncpa %s780, 1
    %782 = vsyncpa [#allocation10], 1
    %783 = vsyncpa [#allocation5], 1
    %s784 = scalar_lea.sflag [#allocation5], 1
    %785 = vsyncpa %s784, 1

</llo_original>
